<compile_context>
chip_gen: v6e
topology: v6e:2x2x1
jax: 0.10.0
libtpu: 0.0.40
codegen_flags: <defaults>
</compile_context>

<pallas_src>
import functools

import jax
import jax.numpy as jnp
from jax.experimental import pallas as pl
from jax.experimental.pallas import tpu as pltpu  # noqa: F401  (TPU backend)

LATENT = 32          # latent_size
BATCH = 4
PRED_SIZE = "small"  # 'small' -> [latent,128,128,1]; 'large' -> [latent,128,128,64,1]
LANE = 128


def _round_up(n, m):
    return ((n + m - 1) // m) * m


# --------------------------------------------------------------------------
# Fused MLP kernel: x -> (Linear -> ReLU) * n_layers, all in one pallas_call.
# refs = (x, w1, b1, w2, b2, ..., wN, bN, out)
# --------------------------------------------------------------------------
def _fused_mlp_kernel(*refs, n_layers):
    x_ref = refs[0]
    o_ref = refs[-1]
    wb = refs[1:-1]
    h = x_ref[...]
    for i in range(n_layers):
        w = wb[2 * i][...]
        b = wb[2 * i + 1][...]
        h = jnp.dot(h, w, preferred_element_type=jnp.float32) + b
        h = jnp.maximum(h, 0.0)          # ReLU follows every layer in the reference
    o_ref[...] = h


def predictor_forward(mu, kernel_layers, out_dim):
    """Run the fused predictor.  mu: (B, latent).  Returns (B, out_dim)."""
    n_layers = len(kernel_layers)
    B = mu.shape[0]
    n_pad = kernel_layers[-1][0].shape[1]
    flat = []
    for w, b in kernel_layers:
        flat += [w, b]
    out_pad = pl.pallas_call(
        functools.partial(_fused_mlp_kernel, n_layers=n_layers),
        out_shape=jax.ShapeDtypeStruct((B, n_pad), jnp.float32),
    )(mu, *flat)
    return out_pad[:, :out_dim]


# --------------------------------------------------------------------------
# deterministic PyTorch-like initialization
# --------------------------------------------------------------------------
def init_predictor_params(key, latent, pred_size):
    if pred_size == "small":
        dims = [latent, 128, 128, 1]
    elif pred_size == "large":
        dims = [latent, 128, 128, 64, 1]
    else:
        raise ValueError(pred_size)

    n_lin = len(dims) - 1
    keys = jax.random.split(key, 2 * n_lin)

    kernel_layers = []   # (W(K_pad, N_pad), b(1, N_pad)) in x@W+b layout, zero-padded
    ref_layers = []      # (W_pt(N, K), b_pt(N,)) PyTorch layout for the reference check

    in_dim = dims[0]
    in_pad = dims[0]     # no need to pad the very first contraction dim
    for i in range(n_lin):
        out_dim = dims[i + 1]
        bound = 1.0 / float(in_dim) ** 0.5
        w_pt = jax.random.uniform(keys[2 * i], (out_dim, in_dim), jnp.float32,
                                  -bound, bound)
        b_pt = jax.random.uniform(keys[2 * i + 1], (out_dim,), jnp.float32,
                                  -bound, bound)
        out_pad = _round_up(out_dim, LANE)
        w = jnp.zeros((in_pad, out_pad), jnp.float32)
        w = w.at[:in_dim, :out_dim].set(w_pt.T)
        b = jnp.zeros((1, out_pad), jnp.float32)
        b = b.at[:, :out_dim].set(b_pt)

        kernel_layers.append((w, b))
        ref_layers.append((w_pt, b_pt))
        in_dim = out_dim
        in_pad = out_pad

    return kernel_layers, ref_layers, dims[-1]


def reference_forward(mu, ref_layers):
    h = mu
    for w_pt, b_pt in ref_layers:
        h = jnp.maximum(h @ w_pt.T + b_pt, 0.0)
    return h


# --------------------------------------------------------------------------
if __name__ == "__main__":
    key = jax.random.PRNGKey(0)
    pkey, mkey = jax.random.split(key)

    kernel_layers, ref_layers, out_dim = init_predictor_params(pkey, LATENT, PRED_SIZE)
    mu = jax.random.normal(mkey, (BATCH, LATENT), jnp.float32)

    run = jax.jit(functools.partial(predictor_forward, out_dim=out_dim))
    pred = run(mu, kernel_layers)
    pred = jax.block_until_ready(pred)

    ref = reference_forward(mu, ref_layers)

    assert pred.shape == (BATCH, out_dim)
    assert bool(jnp.all(jnp.isfinite(pred)))
    assert bool(jnp.allclose(pred, ref, atol=1e-5, rtol=1e-5)), (
        f"mismatch: max abs diff {float(jnp.max(jnp.abs(pred - ref)))}")
    print("KERNEL_OK")
</pallas_src>

<mosaic_0001>
module attributes {stable_mosaic.version = 11 : i64} {
  func.func @_fused_mlp_kernel(%arg0: memref<4x32xf32, #tpu.memory_space<vmem>>, %arg1: memref<32x128xf32, #tpu.memory_space<vmem>>, %arg2: memref<1x128xf32, #tpu.memory_space<vmem>>, %arg3: memref<128x128xf32, #tpu.memory_space<vmem>>, %arg4: memref<1x128xf32, #tpu.memory_space<vmem>>, %arg5: memref<128x128xf32, #tpu.memory_space<vmem>>, %arg6: memref<1x128xf32, #tpu.memory_space<vmem>>, %arg7: memref<4x128xf32, #tpu.memory_space<vmem>>) attributes {dimension_semantics = [], scalar_prefetch = 0 : i64, scratch_operands = 0 : i64, tpu.core_type = #tpu.core_type<tc>} {
    %c0 = arith.constant 0 : index
    %c0_0 = arith.constant 0 : index
    %0 = vector.load %arg0[%c0, %c0_0] : memref<4x32xf32, #tpu.memory_space<vmem>>, vector<4x32xf32>
    %c0_1 = arith.constant 0 : index
    %c0_2 = arith.constant 0 : index
    %1 = vector.load %arg1[%c0_1, %c0_2] : memref<32x128xf32, #tpu.memory_space<vmem>>, vector<32x128xf32>
    %c0_3 = arith.constant 0 : index
    %c0_4 = arith.constant 0 : index
    %2 = vector.load %arg2[%c0_3, %c0_4] : memref<1x128xf32, #tpu.memory_space<vmem>>, vector<1x128xf32>
    %cst = arith.constant dense<0.000000e+00> : vector<4x128xf32>
    %3 = tpu.matmul %0, %1, %cst {dimension_numbers = #tpu.dot_dimension_numbers<[1], [0], [0], [1], [0, 0, 1, 1], [], []>} : vector<4x32xf32>, vector<32x128xf32>, vector<4x128xf32> -> vector<4x128xf32>
    %4 = vector.broadcast %2 : vector<1x128xf32> to vector<4x128xf32>
    %5 = arith.addf %3, %4 : vector<4x128xf32>
    %cst_5 = arith.constant 0.000000e+00 : f32
    %6 = vector.broadcast %cst_5 : f32 to vector<4x128xf32>
    %7 = arith.maximumf %5, %6 : vector<4x128xf32>
    %c0_6 = arith.constant 0 : index
    %c0_7 = arith.constant 0 : index
    %8 = vector.load %arg3[%c0_6, %c0_7] : memref<128x128xf32, #tpu.memory_space<vmem>>, vector<128x128xf32>
    %c0_8 = arith.constant 0 : index
    %c0_9 = arith.constant 0 : index
    %9 = vector.load %arg4[%c0_8, %c0_9] : memref<1x128xf32, #tpu.memory_space<vmem>>, vector<1x128xf32>
    %cst_10 = arith.constant dense<0.000000e+00> : vector<4x128xf32>
    %10 = tpu.matmul %7, %8, %cst_10 {dimension_numbers = #tpu.dot_dimension_numbers<[1], [0], [0], [1], [0, 0, 1, 1], [], []>} : vector<4x128xf32>, vector<128x128xf32>, vector<4x128xf32> -> vector<4x128xf32>
    %11 = vector.broadcast %9 : vector<1x128xf32> to vector<4x128xf32>
    %12 = arith.addf %10, %11 : vector<4x128xf32>
    %cst_11 = arith.constant 0.000000e+00 : f32
    %13 = vector.broadcast %cst_11 : f32 to vector<4x128xf32>
    %14 = arith.maximumf %12, %13 : vector<4x128xf32>
    %c0_12 = arith.constant 0 : index
    %c0_13 = arith.constant 0 : index
    %15 = vector.load %arg5[%c0_12, %c0_13] : memref<128x128xf32, #tpu.memory_space<vmem>>, vector<128x128xf32>
    %c0_14 = arith.constant 0 : index
    %c0_15 = arith.constant 0 : index
    %16 = vector.load %arg6[%c0_14, %c0_15] : memref<1x128xf32, #tpu.memory_space<vmem>>, vector<1x128xf32>
    %cst_16 = arith.constant dense<0.000000e+00> : vector<4x128xf32>
    %17 = tpu.matmul %14, %15, %cst_16 {dimension_numbers = #tpu.dot_dimension_numbers<[1], [0], [0], [1], [0, 0, 1, 1], [], []>} : vector<4x128xf32>, vector<128x128xf32>, vector<4x128xf32> -> vector<4x128xf32>
    %18 = vector.broadcast %16 : vector<1x128xf32> to vector<4x128xf32>
    %19 = arith.addf %17, %18 : vector<4x128xf32>
    %cst_17 = arith.constant 0.000000e+00 : f32
    %20 = vector.broadcast %cst_17 : f32 to vector<4x128xf32>
    %21 = arith.maximumf %19, %20 : vector<4x128xf32>
    %c0_18 = arith.constant 0 : index
    %c0_19 = arith.constant 0 : index
    %22 = vector.load %arg7[%c0_18, %c0_19] : memref<4x128xf32, #tpu.memory_space<vmem>>, vector<4x128xf32>
    tpu.vector_store %arg7[%c0_18, %c0_19], %21 {strides = array<i32>} : memref<4x128xf32, #tpu.memory_space<vmem>>, vector<4x128xf32>,
    return
  }
}

</mosaic_0001>

<llo_original>
// kernel: predictor_forward.1
$region0: #{predictor_forward.1}
  #allocation0 [shape = 'u32[]', space=smem, size = 0x4, offset = 0x4, fixed_abs, tag = 'smem constant byte address 0x4 - core index']
  #allocation1 [shape = 'u32[144,128]{1,0:T(1,128)}', space=vmem, size = 0x12000, scoped, tag = 'internal scratch']
  %s0 = inlined_call_operand.hbm [shape: f32[4,32], index: 0, kind: input, shape index: {}]
  %s1 = inlined_call_operand.hbm [shape: f32[32,128], index: 1, kind: input, shape index: {}]
  %s2 = inlined_call_operand.vmem [shape: f32[1,128], index: 2, kind: input, shape index: {}]
  %s3 = inlined_call_operand.hbm [shape: f32[128,128], index: 3, kind: input, shape index: {}]
  %s4 = inlined_call_operand.vmem [shape: f32[1,128], index: 4, kind: input, shape index: {}]
  %s5 = inlined_call_operand.hbm [shape: f32[128,128], index: 5, kind: input, shape index: {}]
  %s6 = inlined_call_operand.vmem [shape: f32[1,128], index: 6, kind: input, shape index: {}]
  %s7 = inlined_call_operand.vmem [shape: f32[4,128], index: 7, kind: output, shape index: {}]
  %s8 = sld [smem:[#allocation0]]
  $region54: #{predictor_forward.1} parent=0
    _
  %s10 = ssub.s32 1, %s8
  %s11 = scalar_select 0, %s10, %s8
  $region1: #{predictor_forward.1} parent=0
    #allocation2 [shape = 'u8[2048]{0}', space=vmem, size = 0x800, scoped, tag = 'input window, operand 0, single buffered']
    #allocation3 [shape = 's32[1]{0}', space=sflag, size = 0x4, scoped, tag = 'scoped memory for predictor_forward.1']
    #allocation4 [shape = 'u8[16384]{0}', space=vmem, size = 0x4000, scoped, tag = 'input window, operand 1, single buffered']
    #allocation5 [shape = 's32[1]{0}', space=sflag, size = 0x4, scoped, tag = 'scoped memory for predictor_forward.1']
    #allocation6 [shape = 'u8[65536]{0}', space=vmem, size = 0x10000, scoped, tag = 'input window, operand 3, single buffered']
    #allocation7 [shape = 'u8[65536]{0}', space=vmem, size = 0x10000, scoped, tag = 'input window, operand 5, single buffered']
    #allocation8 [shape = 's32[1]{0}', space=sflag, size = 0x4, scoped, tag = 'scoped memory for predictor_forward.1']
    %12 = vsyncpa [#allocation3], 0
    %13 = vsyncpa [#allocation5], 0
    %14 = vsyncpa [#allocation8], 0
    // Predicated region
    $region2: #{predictor_forward.1} parent=1 // pred_check
      _
    $region3: #{predictor_forward.1} parent=1 // pred_check_branch
      %16 = sbr.rel (0) target = $region5
    $region4: #{predictor_forward.1} parent=1 // pred_region
      %s18 = ssub.s32 64, 64
      %19 = vsyncadd [#allocation3], %s18
      %s21 = sshll.u32 [#allocation2], 4
      %s22 = int_to_ptr.vmem [resolvable:$true] %s21
      %24 = dma.hbm_to_vmem [thread:$0]  %s0, 64, %s22, [#allocation3]
    $region5: #{predictor_forward.1} parent=1 // pred_fallthru
      _
    // Predicated region
    $region6: #{predictor_forward.1} parent=1 // pred_check
      _
    $region7: #{predictor_forward.1} parent=1 // pred_check_branch
      %26 = sbr.rel (0) target = $region9
    $region8: #{predictor_forward.1} parent=1 // pred_region
      %s28 = ssub.s32 512, 512
      %29 = vsyncadd [#allocation5], %s28
      %s30 = sshll.u32 [#allocation4], 4
      %s31 = int_to_ptr.vmem [resolvable:$true] %s30
      %36 = dma.hbm_to_vmem [thread:$0]  %s1, 512, %s31, [#allocation5], 128, 128, 8
    $region9: #{predictor_forward.1} parent=1 // pred_fallthru
      _
    // Predicated region
    $region10: #{predictor_forward.1} parent=1 // pred_check
      _
    $region11: #{predictor_forward.1} parent=1 // pred_check_branch
      %38 = sbr.rel (0) target = $region13
    $region12: #{predictor_forward.1} parent=1 // pred_region
      _
    $region13: #{predictor_forward.1} parent=1 // pred_fallthru
      _
    // Predicated region
    $region14: #{predictor_forward.1} parent=1 // pred_check
      _
    $region15: #{predictor_forward.1} parent=1 // pred_check_branch
      %40 = sbr.rel (0) target = $region17
    $region16: #{predictor_forward.1} parent=1 // pred_region
      %s42 = ssub.s32 2048, 2048
      %43 = vsyncadd [#allocation5], %s42
      %s44 = sshll.u32 [#allocation6], 4
      %s45 = int_to_ptr.vmem [resolvable:$true] %s44
      %50 = dma.hbm_to_vmem [thread:$0]  %s3, 2048, %s45, [#allocation5], 128, 128, 8
    $region17: #{predictor_forward.1} parent=1 // pred_fallthru
      _
    // Predicated region
    $region18: #{predictor_forward.1} parent=1 // pred_check
      _
    $region19: #{predictor_forward.1} parent=1 // pred_check_branch
      %52 = sbr.rel (0) target = $region21
    $region20: #{predictor_forward.1} parent=1 // pred_region
      _
    $region21: #{predictor_forward.1} parent=1 // pred_fallthru
      _
    // Predicated region
    $region22: #{predictor_forward.1} parent=1 // pred_check
      _
    $region23: #{predictor_forward.1} parent=1 // pred_check_branch
      %54 = sbr.rel (0) target = $region25
    $region24: #{predictor_forward.1} parent=1 // pred_region
      %s56 = ssub.s32 2048, 2048
      %57 = vsyncadd [#allocation8], %s56
      %s58 = sshll.u32 [#allocation7], 4
      %s59 = int_to_ptr.vmem [resolvable:$true] %s58
      %64 = dma.hbm_to_vmem [thread:$0]  %s5, 2048, %s59, [#allocation8], 128, 128, 8
    $region25: #{predictor_forward.1} parent=1 // pred_fallthru
      _
    // Predicated region
    $region26: #{predictor_forward.1} parent=1 // pred_check
      _
    $region27: #{predictor_forward.1} parent=1 // pred_check_branch
      %66 = sbr.rel (0) target = $region29
    $region28: #{predictor_forward.1} parent=1 // pred_region
      _
    $region29: #{predictor_forward.1} parent=1 // pred_fallthru
      _
    // Predicated region
    $region30: #{predictor_forward.1} parent=1 // pred_check
      _
    $region31: #{predictor_forward.1} parent=1 // pred_check_branch
      %68 = sbr.rel (0) target = $region33
    $region32: #{predictor_forward.1} parent=1 // pred_region
      %69 = dma.done [#allocation3], 64
    $region33: #{predictor_forward.1} parent=1 // pred_fallthru
      _
    // Predicated region
    $region34: #{predictor_forward.1} parent=1 // pred_check
      _
    $region35: #{predictor_forward.1} parent=1 // pred_check_branch
      %71 = sbr.rel (0) target = $region37
    $region36: #{predictor_forward.1} parent=1 // pred_region
      %72 = dma.done [#allocation5], 512
    $region37: #{predictor_forward.1} parent=1 // pred_fallthru
      _
    // Predicated region
    $region38: #{predictor_forward.1} parent=1 // pred_check
      _
    $region39: #{predictor_forward.1} parent=1 // pred_check_branch
      %74 = sbr.rel (0) target = $region41
    $region40: #{predictor_forward.1} parent=1 // pred_region
      %75 = dma.done [#allocation5], 2048
    $region41: #{predictor_forward.1} parent=1 // pred_fallthru
      _
    // Predicated region
    $region42: #{predictor_forward.1} parent=1 // pred_check
      _
    $region43: #{predictor_forward.1} parent=1 // pred_check_branch
      %77 = sbr.rel (0) target = $region45
    $region44: #{predictor_forward.1} parent=1 // pred_region
      %78 = dma.done [#allocation8], 2048
    $region45: #{predictor_forward.1} parent=1 // pred_fallthru
      _
    %v79 = vld [vmem:[#allocation2] sm:$0xf]
    %v80 = vld [vmem:[#allocation4] sm:$0xff]
    %v81 = vld [vmem:[#allocation4 + $0x8] sm:$0xff]
    %v82 = vld [vmem:[#allocation4 + $0x10] sm:$0xff]
    %v83 = vld [vmem:[#allocation4 + $0x18] sm:$0xff]
    %v84 = vld [vmem:[%s2] sm:$0x1]
    %v86 = vlaneseq
    %v87 = vshrl.u32 %v86, 7
    %v88 = vsub.s32 0, %v87
    %v89 = vrot.slane %v84, %v88
    %vm91 = vcmask 261120
    %v93 = vsel %vm91, %v79, 0
    %95 = vmatprep.subr.mxu0 0.0
    %96 = vmatpush1.msra.mxu0 0.0
    %97 = vmatprep.subr.mxu0 0.0
    %98 = vmatpush1.msra.mxu0 0.0
    %99 = vmatprep.subr.mxu0 0.0
    %100 = vmatpush1.msra.mxu0 0.0
    %101 = vmatprep.subr.mxu0 0.0
    %102 = vmatpush1.msra.mxu0 0.0
    %103 = vmatprep.subr.mxu0 0.0
    %104 = vmatpush1.msra.mxu0 0.0
    %105 = vmatprep.subr.mxu0 0.0
    %106 = vmatpush1.msra.mxu0 0.0
    %107 = vmatprep.subr.mxu0 0.0
    %108 = vmatpush1.msra.mxu0 0.0
    %109 = vmatprep.subr.mxu0 0.0
    %110 = vmatpush1.msra.mxu0 0.0
    %111 = vmatprep.subr.mxu0 0.0
    %112 = vmatpush1.msra.mxu0 0.0
    %113 = vmatprep.subr.mxu0 0.0
    %114 = vmatpush1.msra.mxu0 0.0
    %115 = vmatprep.subr.mxu0 0.0
    %116 = vmatpush1.msra.mxu0 0.0
    %117 = vmatprep.subr.mxu0 0.0
    %118 = vmatpush1.msra.mxu0 0.0
    %119 = vmatprep.subr.mxu0 0.0
    %120 = vmatpush1.msra.mxu0 %v83
    %121 = vmatprep.subr.mxu0 0.0
    %122 = vmatpush1.msra.mxu0 %v82
    %123 = vmatprep.subr.mxu0 0.0
    %124 = vmatpush1.msra.mxu0 %v81
    %125 = vmatprep.subr.mxu0 0.0
    %126 = vmatpush1.msra.mxu0 %v80
    %127 = vmatprep.subr.mxu0 0.0
    %128 = vmatpush2.msra.mxu0 0.0
    %129 = vmatprep.subr.mxu0 0.0
    %130 = vmatpush2.msra.mxu0 0.0
    %131 = vmatprep.subr.mxu0 0.0
    %132 = vmatpush2.msra.mxu0 0.0
    %133 = vmatprep.subr.mxu0 0.0
    %134 = vmatpush2.msra.mxu0 0.0
    %135 = vmatprep.subr.mxu0 0.0
    %136 = vmatpush2.msra.mxu0 0.0
    %137 = vmatprep.subr.mxu0 0.0
    %138 = vmatpush2.msra.mxu0 0.0
    %139 = vmatprep.subr.mxu0 0.0
    %140 = vmatpush2.msra.mxu0 0.0
    %141 = vmatprep.subr.mxu0 0.0
    %142 = vmatpush2.msra.mxu0 0.0
    %143 = vmatprep.subr.mxu0 0.0
    %144 = vmatpush2.msra.mxu0 0.0
    %145 = vmatprep.subr.mxu0 0.0
    %146 = vmatpush2.msra.mxu0 0.0
    %147 = vmatprep.subr.mxu0 0.0
    %148 = vmatpush2.msra.mxu0 0.0
    %149 = vmatprep.subr.mxu0 0.0
    %150 = vmatpush2.msra.mxu0 0.0
    %151 = vmatprep.subr.mxu0 0.0
    %152 = vmatpush2.msra.mxu0 0.0
    %153 = vmatprep.subr.mxu0 0.0
    %154 = vmatpush2.msra.mxu0 0.0
    %155 = vmatprep.subr.mxu0 0.0
    %156 = vmatpush2.msra.mxu0 0.0
    %157 = vmatprep.subr.mxu0 0.0
    %158 = vmatpush2.msra.mxu0 0.0
    %159 = vmatprep.mubr.f32.mxu0 0.0
    %160 = vmatmul.mubr.f32.gmra.mxu0 %v93
    %v161 = vpop.f32.mrf.mxu0
    %v162 = vadd.f32 %v89, %v161
    %v163 = vpop.f32.mrf.mxu0
    %164 = vdwg.mxu0
    %v165 = vmax.f32 %v162, 0.0
    %v166 = vld [vmem:[#allocation6] sm:$0xff]
    %v167 = vld [vmem:[#allocation6 + $0x8] sm:$0xff]
    %v168 = vld [vmem:[#allocation6 + $0x10] sm:$0xff]
    %v169 = vld [vmem:[#allocation6 + $0x18] sm:$0xff]
    %v170 = vld [vmem:[#allocation6 + $0x20] sm:$0xff]
    %v171 = vld [vmem:[#allocation6 + $0x28] sm:$0xff]
    %v172 = vld [vmem:[#allocation6 + $0x30] sm:$0xff]
    %v173 = vld [vmem:[#allocation6 + $0x38] sm:$0xff]
    %v174 = vld [vmem:[#allocation6 + $0x40] sm:$0xff]
    %v175 = vld [vmem:[#allocation6 + $0x48] sm:$0xff]
    %v176 = vld [vmem:[#allocation6 + $0x50] sm:$0xff]
    %v177 = vld [vmem:[#allocation6 + $0x58] sm:$0xff]
    %v178 = vld [vmem:[#allocation6 + $0x60] sm:$0xff]
    %v179 = vld [vmem:[#allocation6 + $0x68] sm:$0xff]
    %v180 = vld [vmem:[#allocation6 + $0x70] sm:$0xff]
    %v181 = vld [vmem:[#allocation6 + $0x78] sm:$0xff]
    %v182 = vld [vmem:[%s4] sm:$0x1]
    %v184 = vlaneseq
    %v185 = vshrl.u32 %v184, 7
    %v186 = vsub.s32 0, %v185
    %v187 = vrot.slane %v182, %v186
    %189 = vmatprep.subr.mxu0 0.0
    %190 = vmatpush1.msra.mxu0 %v181
    %191 = vmatprep.subr.mxu0 0.0
    %192 = vmatpush1.msra.mxu0 %v180
    %193 = vmatprep.subr.mxu0 0.0
    %194 = vmatpush1.msra.mxu0 %v179
    %195 = vmatprep.subr.mxu0 0.0
    %196 = vmatpush1.msra.mxu0 %v178
    %197 = vmatprep.subr.mxu0 0.0
    %198 = vmatpush1.msra.mxu0 %v177
    %199 = vmatprep.subr.mxu0 0.0
    %200 = vmatpush1.msra.mxu0 %v176
    %201 = vmatprep.subr.mxu0 0.0
    %202 = vmatpush1.msra.mxu0 %v175
    %203 = vmatprep.subr.mxu0 0.0
    %204 = vmatpush1.msra.mxu0 %v174
    %205 = vmatprep.subr.mxu0 0.0
    %206 = vmatpush1.msra.mxu0 %v173
    %207 = vmatprep.subr.mxu0 0.0
    %208 = vmatpush1.msra.mxu0 %v172
    %209 = vmatprep.subr.mxu0 0.0
    %210 = vmatpush1.msra.mxu0 %v171
    %211 = vmatprep.subr.mxu0 0.0
    %212 = vmatpush1.msra.mxu0 %v170
    %213 = vmatprep.subr.mxu0 0.0
    %214 = vmatpush1.msra.mxu0 %v169
    %215 = vmatprep.subr.mxu0 0.0
    %216 = vmatpush1.msra.mxu0 %v168
    %217 = vmatprep.subr.mxu0 0.0
    %218 = vmatpush1.msra.mxu0 %v167
    %219 = vmatprep.subr.mxu0 0.0
    %220 = vmatpush1.msra.mxu0 %v166
    %221 = vmatprep.subr.mxu0 0.0
    %222 = vmatpush2.msra.mxu0 0.0
    %223 = vmatprep.subr.mxu0 0.0
    %224 = vmatpush2.msra.mxu0 0.0
    %225 = vmatprep.subr.mxu0 0.0
    %226 = vmatpush2.msra.mxu0 0.0
    %227 = vmatprep.subr.mxu0 0.0
    %228 = vmatpush2.msra.mxu0 0.0
    %229 = vmatprep.subr.mxu0 0.0
    %230 = vmatpush2.msra.mxu0 0.0
    %231 = vmatprep.subr.mxu0 0.0
    %232 = vmatpush2.msra.mxu0 0.0
    %233 = vmatprep.subr.mxu0 0.0
    %234 = vmatpush2.msra.mxu0 0.0
    %235 = vmatprep.subr.mxu0 0.0
    %236 = vmatpush2.msra.mxu0 0.0
    %237 = vmatprep.subr.mxu0 0.0
    %238 = vmatpush2.msra.mxu0 0.0
    %239 = vmatprep.subr.mxu0 0.0
    %240 = vmatpush2.msra.mxu0 0.0
    %241 = vmatprep.subr.mxu0 0.0
    %242 = vmatpush2.msra.mxu0 0.0
    %243 = vmatprep.subr.mxu0 0.0
    %244 = vmatpush2.msra.mxu0 0.0
    %245 = vmatprep.subr.mxu0 0.0
    %246 = vmatpush2.msra.mxu0 0.0
    %247 = vmatprep.subr.mxu0 0.0
    %248 = vmatpush2.msra.mxu0 0.0
    %249 = vmatprep.subr.mxu0 0.0
    %250 = vmatpush2.msra.mxu0 0.0
    %251 = vmatprep.subr.mxu0 0.0
    %252 = vmatpush2.msra.mxu0 0.0
    %253 = vmatprep.mubr.f32.mxu0 0.0
    %254 = vmatmul.mubr.f32.gmra.mxu0 %v165
    %v255 = vpop.f32.mrf.mxu0
    %v256 = vadd.f32 %v187, %v255
    %v257 = vpop.f32.mrf.mxu0
    %258 = vdwg.mxu0
    %v259 = vmax.f32 %v256, 0.0
    %v260 = vld [vmem:[#allocation7] sm:$0xff]
    %v261 = vld [vmem:[#allocation7 + $0x8] sm:$0xff]
    %v262 = vld [vmem:[#allocation7 + $0x10] sm:$0xff]
    %v263 = vld [vmem:[#allocation7 + $0x18] sm:$0xff]
    %v264 = vld [vmem:[#allocation7 + $0x20] sm:$0xff]
    %v265 = vld [vmem:[#allocation7 + $0x28] sm:$0xff]
    %v266 = vld [vmem:[#allocation7 + $0x30] sm:$0xff]
    %v267 = vld [vmem:[#allocation7 + $0x38] sm:$0xff]
    %v268 = vld [vmem:[#allocation7 + $0x40] sm:$0xff]
    %v269 = vld [vmem:[#allocation7 + $0x48] sm:$0xff]
    %v270 = vld [vmem:[#allocation7 + $0x50] sm:$0xff]
    %v271 = vld [vmem:[#allocation7 + $0x58] sm:$0xff]
    %v272 = vld [vmem:[#allocation7 + $0x60] sm:$0xff]
    %v273 = vld [vmem:[#allocation7 + $0x68] sm:$0xff]
    %v274 = vld [vmem:[#allocation7 + $0x70] sm:$0xff]
    %v275 = vld [vmem:[#allocation7 + $0x78] sm:$0xff]
    %v276 = vld [vmem:[%s6] sm:$0x1]
    %v278 = vlaneseq
    %v279 = vshrl.u32 %v278, 7
    %v280 = vsub.s32 0, %v279
    %v281 = vrot.slane %v276, %v280
    %283 = vmatprep.subr.mxu0 0.0
    %284 = vmatpush1.msra.mxu0 %v275
    %285 = vmatprep.subr.mxu0 0.0
    %286 = vmatpush1.msra.mxu0 %v274
    %287 = vmatprep.subr.mxu0 0.0
    %288 = vmatpush1.msra.mxu0 %v273
    %289 = vmatprep.subr.mxu0 0.0
    %290 = vmatpush1.msra.mxu0 %v272
    %291 = vmatprep.subr.mxu0 0.0
    %292 = vmatpush1.msra.mxu0 %v271
    %293 = vmatprep.subr.mxu0 0.0
    %294 = vmatpush1.msra.mxu0 %v270
    %295 = vmatprep.subr.mxu0 0.0
    %296 = vmatpush1.msra.mxu0 %v269
    %297 = vmatprep.subr.mxu0 0.0
    %298 = vmatpush1.msra.mxu0 %v268
    %299 = vmatprep.subr.mxu0 0.0
    %300 = vmatpush1.msra.mxu0 %v267
    %301 = vmatprep.subr.mxu0 0.0
    %302 = vmatpush1.msra.mxu0 %v266
    %303 = vmatprep.subr.mxu0 0.0
    %304 = vmatpush1.msra.mxu0 %v265
    %305 = vmatprep.subr.mxu0 0.0
    %306 = vmatpush1.msra.mxu0 %v264
    %307 = vmatprep.subr.mxu0 0.0
    %308 = vmatpush1.msra.mxu0 %v263
    %309 = vmatprep.subr.mxu0 0.0
    %310 = vmatpush1.msra.mxu0 %v262
    %311 = vmatprep.subr.mxu0 0.0
    %312 = vmatpush1.msra.mxu0 %v261
    %313 = vmatprep.subr.mxu0 0.0
    %314 = vmatpush1.msra.mxu0 %v260
    %315 = vmatprep.subr.mxu0 0.0
    %316 = vmatpush2.msra.mxu0 0.0
    %317 = vmatprep.subr.mxu0 0.0
    %318 = vmatpush2.msra.mxu0 0.0
    %319 = vmatprep.subr.mxu0 0.0
    %320 = vmatpush2.msra.mxu0 0.0
    %321 = vmatprep.subr.mxu0 0.0
    %322 = vmatpush2.msra.mxu0 0.0
    %323 = vmatprep.subr.mxu0 0.0
    %324 = vmatpush2.msra.mxu0 0.0
    %325 = vmatprep.subr.mxu0 0.0
    %326 = vmatpush2.msra.mxu0 0.0
    %327 = vmatprep.subr.mxu0 0.0
    %328 = vmatpush2.msra.mxu0 0.0
    %329 = vmatprep.subr.mxu0 0.0
    %330 = vmatpush2.msra.mxu0 0.0
    %331 = vmatprep.subr.mxu0 0.0
    %332 = vmatpush2.msra.mxu0 0.0
    %333 = vmatprep.subr.mxu0 0.0
    %334 = vmatpush2.msra.mxu0 0.0
    %335 = vmatprep.subr.mxu0 0.0
    %336 = vmatpush2.msra.mxu0 0.0
    %337 = vmatprep.subr.mxu0 0.0
    %338 = vmatpush2.msra.mxu0 0.0
    %339 = vmatprep.subr.mxu0 0.0
    %340 = vmatpush2.msra.mxu0 0.0
    %341 = vmatprep.subr.mxu0 0.0
    %342 = vmatpush2.msra.mxu0 0.0
    %343 = vmatprep.subr.mxu0 0.0
    %344 = vmatpush2.msra.mxu0 0.0
    %345 = vmatprep.subr.mxu0 0.0
    %346 = vmatpush2.msra.mxu0 0.0
    %347 = vmatprep.mubr.f32.mxu0 0.0
    %348 = vmatmul.mubr.f32.gmra.mxu0 %v259
    %v349 = vpop.f32.mrf.mxu0
    %v350 = vadd.f32 %v281, %v349
    %v351 = vpop.f32.mrf.mxu0
    %352 = vdwg.mxu0
    %v353 = vmax.f32 %v350, 0.0
    %354 = vst [vmem:[%s7] sm:$0xf] %v353
    // Predicated region
    $region46: #{predictor_forward.1} parent=1 // pred_check
      _
    $region47: #{predictor_forward.1} parent=1 // pred_check_branch
      %356 = sbr.rel (0) target = $region49
    $region48: #{predictor_forward.1} parent=1 // pred_region
      _
    $region49: #{predictor_forward.1} parent=1 // pred_fallthru
      _
    // Predicated region
    $region50: #{predictor_forward.1} parent=1 // pred_check
      _
    $region51: #{predictor_forward.1} parent=1 // pred_check_branch
      %358 = sbr.rel (0) target = $region53
    $region52: #{predictor_forward.1} parent=1 // pred_region
      _
    $region53: #{predictor_forward.1} parent=1 // pred_fallthru
      _
    %359 = vsyncpa [#allocation3], 1
    %360 = vsyncpa [#allocation5], 1
    %361 = vsyncpa [#allocation8], 1

</llo_original>
